<compile_context>
chip_gen: v7x
topology: tpu7x:2x2x1
jax: 0.10.0
libtpu: 0.0.40
codegen_flags: <defaults>
</compile_context>

<pallas_src>
import jax
import jax.numpy as jnp
from jax.experimental import pallas as pl
from jax.experimental.pallas import tpu as pltpu


def _round_up(x, m):
    return ((x + m - 1) // m) * m


# ----------------------------- Pallas kernel ------------------------------- #

def _matmul_bias_relu_kernel(x_ref, w_ref, b_ref, o_ref, acc_ref):
    """One grid step of the folded-taps conv-as-matmul.

    x_ref  : (TM, TK) bf16  activation tile (taps folded into K)
    w_ref  : (TK, TN) bf16  weight tile
    b_ref  : (1,  TN) f32   bias tile (used at finalize only)
    o_ref  : (TM, TN) bf16  output tile (resident across the reduction axis)
    acc_ref: (TM, TN) f32   VMEM accumulator scratch
    """
    t = pl.program_id(3)

    @pl.when(t == 0)
    def _init():
        acc_ref[...] = jnp.zeros_like(acc_ref)

    # Hot loop: pure MXU accumulate (bf16 inputs, f32 accumulator).
    acc_ref[...] += jnp.dot(x_ref[...], w_ref[...],
                            preferred_element_type=jnp.float32)

    @pl.when(t == pl.num_programs(3) - 1)
    def _finalize():
        res = jnp.maximum(acc_ref[...] + b_ref[...], 0.0)
        o_ref[...] = res.astype(o_ref.dtype)


# ------------------------------ Conv wrapper -------------------------------- #

def conv2d_relu_pallas(x_nchw, weight, bias, *, stride, pad):
    """Strided conv + bias + ReLU as a single tiled Pallas matmul.

    x_nchw: (B, C, H, W) f32 ; weight: (OC, C, KH, KW) f32 ; bias: (OC,) f32.
    Returns channels-last features (B, Ho, Wo, OC) in bf16.
    """
    B, C, H, W = x_nchw.shape
    OC, _, KH, KW = weight.shape
    s = stride
    Ho = (H + 2 * pad - KH) // s + 1
    Wo = (W + 2 * pad - KW) // s + 1
    M = Ho * Wo
    K = KH * KW * C

    # TODO(synk): the space-to-batch phase decomposition requires kernel <= stride;
    # the general stride < kernel case (real ResNet layer4) would need an
    # in-kernel strided / overlapping-window load path instead.
    assert KH <= s and KW <= s, "surrogate conv assumes kernel <= stride"

    # --- Fold kernel taps into the contraction dim (pure layout transform):
    #     x_fold[b, oh*Wo + ow, (kh*KW + kw)*C + c] = x_pad[b, c, oh*s + kh, ow*s + kw]
    pad_h_hi = pad + max(0, Ho * s - (H + 2 * pad))
    pad_w_hi = pad + max(0, Wo * s - (W + 2 * pad))
    xp = jnp.pad(x_nchw, ((0, 0), (0, 0), (pad, pad_h_hi), (pad, pad_w_hi)))
    xp = xp[:, :, :Ho * s, :Wo * s]                       # (B, C, Ho*s, Wo*s)
    xp = xp.reshape(B, C, Ho, s, Wo, s)
    x_fold = xp.transpose(0, 2, 4, 3, 5, 1)               # (B, Ho, Wo, s, s, C)
    x_fold = x_fold[:, :, :, :KH, :KW, :].reshape(B, M, K)

    # --- Weights to (KH*KW*C, OC), matching the x_fold K ordering.
    w_fold = weight.transpose(2, 3, 1, 0).reshape(K, OC)

    # --- Tile selection (same code path on v5e/v6e/v7x; all fits 32 MiB scoped):
    #     2*(TM*TK + TK*TN)*2B + 2*TM*TN*2B + TM*TN*4B  <= ~4 MiB at 512/512/512.
    OCp = _round_up(OC, 128)
    if OCp % 512 == 0:
        TN = 512
    elif OCp % 256 == 0:
        TN = 256
    else:
        TN = 128

    if M >= 512:
        TM = 512
    elif M >= 256:
        TM = 256
    else:
        TM = _round_up(M, 16)
    Mp = _round_up(M, TM)

    Kp128 = _round_up(K, 128)
    TK = Kp128 if Kp128 <= 512 else 512
    Kp = _round_up(K, TK)
    nK = Kp // TK

    # Zero-pad (zero K-padding contributes nothing; padded M/OC sliced off below),
    # bf16 on the MXU with f32 accumulation inside the kernel.
    x_fold = jnp.pad(x_fold, ((0, 0), (0, Mp - M), (0, Kp - K))).astype(jnp.bfloat16)
    w_fold = jnp.pad(w_fold, ((0, Kp - K), (0, OCp - OC))).astype(jnp.bfloat16)
    bias_p = jnp.pad(bias, (0, OCp - OC)).reshape(1, OCp).astype(jnp.float32)

    grid = (B, Mp // TM, OCp // TN, nK)   # (batch, M tiles, OC tiles, K chunks)

    out = pl.pallas_call(
        _matmul_bias_relu_kernel,
        out_shape=jax.ShapeDtypeStruct((B, Mp, OCp), jnp.bfloat16),
        grid_spec=pltpu.PrefetchScalarGridSpec(
            num_scalar_prefetch=0,
            grid=grid,
            in_specs=[
                # activations: (TM, TK) tile, batch dim squeezed away
                pl.BlockSpec((pl.Squeezed(), TM, TK),
                             lambda b, m, j, t: (b, m, t)),
                # weights: (TK, TN) tile
                pl.BlockSpec((TK, TN),
                             lambda b, m, j, t: (t, j)),
                # bias: (1, TN) tile, resident across the reduction
                pl.BlockSpec((1, TN),
                             lambda b, m, j, t: (0, j)),
            ],
            out_specs=pl.BlockSpec((pl.Squeezed(), TM, TN),
                                   lambda b, m, j, t: (b, m, j)),
            scratch_shapes=[pltpu.VMEM((TM, TN), jnp.float32)],
        ),
        compiler_params=pltpu.CompilerParams(
            dimension_semantics=("parallel", "parallel", "parallel", "arbitrary"),
            vmem_limit_bytes=32 * 1024 * 1024,
        ),
    )(x_fold, w_fold, bias_p)

    # Channels-last at the module boundary (no NCHW transpose; see perf review).
    return out[:, :M, :OC].reshape(B, Ho, Wo, OC)


# --------------------------- Mask nearest resize ---------------------------- #

def interpolate_mask_nearest(mask, out_hw):
    """PyTorch F.interpolate(mode='nearest') on a bool mask (src = dst*in//out).

    Plain JAX gather: ~B*Ho*Wo elements of work; a kernel launch is not justified.
    """
    B, H, W = mask.shape
    Ho, Wo = out_hw
    h_idx = (jnp.arange(Ho) * H) // Ho
    w_idx = (jnp.arange(Wo) * W) // Wo
    return mask[:, h_idx][:, :, w_idx]


# ------------------------------- Module port -------------------------------- #

class BackboneBase:
    """Pallas port of DETR BackboneBase: body -> {'0': (features, resized mask)}.

    Note: features are returned channels-last (B, Ho, Wo, OC) in bf16 (perf
    decision — DETR flattens spatial dims downstream); values match the NCHW
    PyTorch output up to the layout permutation and bf16 rounding.
    """

    def __init__(self, key, in_channels, num_channels, kernel=3, stride=4, pad=1):
        self.num_channels = num_channels
        self.kernel = kernel
        self.stride = stride
        self.pad = pad
        kw_, kb_ = jax.random.split(key)
        fan_in = in_channels * kernel * kernel
        self.weight = (jax.random.normal(
            kw_, (num_channels, in_channels, kernel, kernel), jnp.float32)
            / jnp.sqrt(jnp.float32(fan_in)))
        self.bias = 0.01 * jax.random.normal(kb_, (num_channels,), jnp.float32)

    def __call__(self, tensors, mask):
        # tensors: [B, C, H, W] f32 (NCHW), mask: [B, H, W] bool (True = padding)
        feat = conv2d_relu_pallas(tensors, self.weight, self.bias,
                                  stride=self.stride, pad=self.pad)
        m = interpolate_mask_nearest(mask, feat.shape[1:3])
        return {'0': (feat, m)}


# ------------------------------ Demo / check -------------------------------- #

if __name__ == "__main__":
    key = jax.random.PRNGKey(0)
    k_x, k_m, k_p = jax.random.split(key, 3)

    B, C, H, W = 2, 4, 16, 16
    NUM_CHANNELS = 128   # 128-multiple per perf review (real DETR uses 2048)

    x = jax.random.normal(k_x, (B, C, H, W), jnp.float32)
    mask = jax.random.bernoulli(k_m, 0.3, (B, H, W))   # bool padding mask

    backbone = BackboneBase(k_p, in_channels=C, num_channels=NUM_CHANNELS)
    out = backbone(x, mask)
    feat, out_mask = out['0']
    feat = jax.block_until_ready(feat)
    out_mask = jax.block_until_ready(out_mask)

    Ho, Wo = feat.shape[1], feat.shape[2]
    assert feat.shape == (B, Ho, Wo, NUM_CHANNELS) and feat.dtype == jnp.bfloat16
    assert (Ho, Wo) == (4, 4)

    # ---- conv reference (same bf16-rounded inputs, f32 accumulation) --------
    x_bf = x.astype(jnp.bfloat16).astype(jnp.float32)
    w_bf = backbone.weight.astype(jnp.bfloat16).astype(jnp.float32)
    ref_feat = jax.lax.conv_general_dilated(
        x_bf, w_bf,
        window_strides=(backbone.stride, backbone.stride),
        padding=((backbone.pad, backbone.pad), (backbone.pad, backbone.pad)),
        dimension_numbers=('NCHW', 'OIHW', 'NCHW'))
    ref_feat = jnp.maximum(ref_feat + backbone.bias[None, :, None, None], 0.0)
    ref_nhwc = ref_feat.transpose(0, 2, 3, 1)
    assert bool(jnp.allclose(feat.astype(jnp.float32), ref_nhwc,
                             atol=2e-2, rtol=2e-2))

    # ---- nearest-interp mask reference (PyTorch floor indexing) -------------
    h_idx = (jnp.arange(Ho) * H) // Ho
    w_idx = (jnp.arange(Wo) * W) // Wo
    ref_mask = mask[:, h_idx][:, :, w_idx]
    assert out_mask.dtype == jnp.bool_ and out_mask.shape == (B, Ho, Wo)
    assert bool(jnp.all(out_mask == ref_mask))

    print("KERNEL_OK")
</pallas_src>

<mosaic_0001>
module attributes {stable_mosaic.version = 11 : i64} {
  func.func @_matmul_bias_relu_kernel(%arg0: i32, %arg1: i32, %arg2: i32, %arg3: i32, %arg4: memref<1x16x128xbf16, #tpu.memory_space<vmem>>, %arg5: memref<128x128xbf16, #tpu.memory_space<vmem>>, %arg6: memref<1x128xf32, #tpu.memory_space<vmem>>, %arg7: memref<1x16x128xbf16, #tpu.memory_space<vmem>>, %arg8: memref<16x128xf32, #tpu.memory_space<vmem>>) attributes {dimension_semantics = [#tpu.dimension_semantics<parallel>, #tpu.dimension_semantics<parallel>, #tpu.dimension_semantics<parallel>, #tpu.dimension_semantics<arbitrary>], iteration_bounds = array<i64: 2, 1, 1, 1>, scalar_prefetch = 0 : i64, scratch_operands = 1 : i64, tpu.core_type = #tpu.core_type<tc>, window_params = [{transform_indices = @transform_0, window_bounds = array<i64: 1, 16, 128>}, {transform_indices = @transform_1, window_bounds = array<i64: 128, 128>}, {transform_indices = @transform_2, window_bounds = array<i64: 1, 128>}, {transform_indices = @transform_3, window_bounds = array<i64: 1, 16, 128>}]} {
    %c0_i32 = arith.constant 0 : i32
    %0 = arith.cmpi eq, %arg3, %c0_i32 : i32
    %1 = arith.extui %0 : i1 to i32
    %c0_i32_0 = arith.constant 0 : i32
    %2 = arith.cmpi ne, %1, %c0_i32_0 : i32
    scf.if %2 {
      %cst_11 = arith.constant 0.000000e+00 : f32
      %13 = vector.broadcast %cst_11 : f32 to vector<16x128xf32>
      %c0_12 = arith.constant 0 : index
      %c0_13 = arith.constant 0 : index
      %14 = vector.load %arg8[%c0_12, %c0_13] : memref<16x128xf32, #tpu.memory_space<vmem>>, vector<16x128xf32>
      tpu.vector_store %arg8[%c0_12, %c0_13], %13 {strides = array<i32>} : memref<16x128xf32, #tpu.memory_space<vmem>>, vector<16x128xf32>,
    } else {
    }
    %c0 = arith.constant 0 : index
    %c0_1 = arith.constant 0 : index
    %3 = vector.load %arg8[%c0, %c0_1] : memref<16x128xf32, #tpu.memory_space<vmem>>, vector<16x128xf32>
    %c0_2 = arith.constant 0 : index
    %c0_3 = arith.constant 0 : index
    %c0_4 = arith.constant 0 : index
    %4 = vector.load %arg4[%c0_2, %c0_3, %c0_4] : memref<1x16x128xbf16, #tpu.memory_space<vmem>>, vector<1x16x128xbf16>
    %5 = vector.shape_cast %4 : vector<1x16x128xbf16> to vector<16x128xbf16>
    %c0_5 = arith.constant 0 : index
    %c0_6 = arith.constant 0 : index
    %6 = vector.load %arg5[%c0_5, %c0_6] : memref<128x128xbf16, #tpu.memory_space<vmem>>, vector<128x128xbf16>
    %cst = arith.constant dense<0.000000e+00> : vector<16x128xf32>
    %7 = tpu.matmul %5, %6, %cst {dimension_numbers = #tpu.dot_dimension_numbers<[1], [0], [0], [1], [0, 0, 1, 1], [], []>} : vector<16x128xbf16>, vector<128x128xbf16>, vector<16x128xf32> -> vector<16x128xf32>
    %8 = arith.addf %3, %7 : vector<16x128xf32>
    %c0_7 = arith.constant 0 : index
    %c0_8 = arith.constant 0 : index
    %9 = vector.load %arg8[%c0_7, %c0_8] : memref<16x128xf32, #tpu.memory_space<vmem>>, vector<16x128xf32>
    tpu.vector_store %arg8[%c0_7, %c0_8], %8 {strides = array<i32>} : memref<16x128xf32, #tpu.memory_space<vmem>>, vector<16x128xf32>,
    %c0_i32_9 = arith.constant 0 : i32
    %10 = arith.cmpi eq, %arg3, %c0_i32_9 : i32
    %11 = arith.extui %10 : i1 to i32
    %c0_i32_10 = arith.constant 0 : i32
    %12 = arith.cmpi ne, %11, %c0_i32_10 : i32
    scf.if %12 {
      %c0_11 = arith.constant 0 : index
      %c0_12 = arith.constant 0 : index
      %13 = vector.load %arg8[%c0_11, %c0_12] : memref<16x128xf32, #tpu.memory_space<vmem>>, vector<16x128xf32>
      %c0_13 = arith.constant 0 : index
      %c0_14 = arith.constant 0 : index
      %14 = vector.load %arg6[%c0_13, %c0_14] : memref<1x128xf32, #tpu.memory_space<vmem>>, vector<1x128xf32>
      %15 = vector.broadcast %14 : vector<1x128xf32> to vector<16x128xf32>
      %16 = arith.addf %13, %15 : vector<16x128xf32>
      %cst_15 = arith.constant 0.000000e+00 : f32
      %17 = vector.broadcast %cst_15 : f32 to vector<16x128xf32>
      %18 = arith.maximumf %16, %17 : vector<16x128xf32>
      %19 = arith.truncf %18 : vector<16x128xf32> to vector<16x128xbf16>
      %c0_16 = arith.constant 0 : index
      %c0_17 = arith.constant 0 : index
      %c0_18 = arith.constant 0 : index
      %20 = vector.load %arg7[%c0_16, %c0_17, %c0_18] : memref<1x16x128xbf16, #tpu.memory_space<vmem>>, vector<1x16x128xbf16>
      %21 = vector.shape_cast %20 : vector<1x16x128xbf16> to vector<16x128xbf16>
      %22 = vector.shape_cast %19 : vector<16x128xbf16> to vector<1x16x128xbf16>
      tpu.vector_store %arg7[%c0_16, %c0_17, %c0_18], %22 {strides = array<i32>} : memref<1x16x128xbf16, #tpu.memory_space<vmem>>, vector<1x16x128xbf16>,
    } else {
    }
    return
  }
  func.func @transform_0(%arg0: i32, %arg1: i32, %arg2: i32, %arg3: i32) -> (i32, i32, i32) {
    %c0_i32 = arith.constant 0 : i32
    return %arg0, %arg1, %arg3 : i32, i32, i32
  }
  func.func @transform_1(%arg0: i32, %arg1: i32, %arg2: i32, %arg3: i32) -> (i32, i32) {
    %c0_i32 = arith.constant 0 : i32
    return %arg3, %arg2 : i32, i32
  }
  func.func @transform_2(%arg0: i32, %arg1: i32, %arg2: i32, %arg3: i32) -> (i32, i32) {
    %c0_i32 = arith.constant 0 : i32
    %c0_i32_0 = arith.constant 0 : i32
    return %c0_i32, %arg2 : i32, i32
  }
  func.func @transform_3(%arg0: i32, %arg1: i32, %arg2: i32, %arg3: i32) -> (i32, i32, i32) {
    %c0_i32 = arith.constant 0 : i32
    return %arg0, %arg1, %arg2 : i32, i32, i32
  }
}

</mosaic_0001>

<llo_original>
// kernel: tpu_custom_call.1
$region0: #{tpu_custom_call.1}
  #allocation0 [shape = 'u32[]', space=smem, size = 0x4, offset = 0x4, fixed_abs, tag = 'smem constant byte address 0x4 - core index']
  #allocation1 [shape = 'u32[144,128]{1,0:T(1,128)}', space=vmem, size = 0x12000, scoped, tag = 'internal scratch']
  #allocation2 [shape = 'f32[16,128]{1,0:T(8,128)}', space=vmem, size = 0x2000, scoped, tag = 'scratch operand']
  %s0 = inlined_call_operand.hbm [shape: bf16[2,16,128], index: 0, kind: input, shape index: {}]
  %s1 = inlined_call_operand.hbm [shape: bf16[128,128], index: 1, kind: input, shape index: {}]
  %s2 = inlined_call_operand.vmem [shape: f32[1,128], index: 2, kind: input, shape index: {}]
  %s3 = inlined_call_operand.hbm [shape: bf16[2,16,128], index: 3, kind: output, shape index: {}]
  %s4 = sld [smem:[#allocation0]]
  $region61: #{tpu_custom_call.1} parent=0
    _
  %s6 = ssub.s32 1, %s4
  %s7 = scalar_select 0, %s6, %s4
  $region1: #{tpu_custom_call.1} parent=0
    #allocation3 [shape = 'u8[8192]{0}', space=vmem, size = 0x2000, scoped, tag = 'input window, operand 0']
    #allocation4 [shape = 's32[2]{0}', space=sflag, size = 0x8, scoped, tag = 'scoped memory for tpu_custom_call.1']
    #allocation5 [shape = 's32[2]{0}', space=sflag, size = 0x8, scoped, tag = 'scoped memory for tpu_custom_call.1']
    #allocation6 [shape = 'u8[32768]{0}', space=vmem, size = 0x8000, scoped, tag = 'input window, operand 1, single buffered']
    #allocation7 [shape = 's32[1]{0}', space=sflag, size = 0x4, scoped, tag = 'scoped memory for tpu_custom_call.1']
    #allocation8 [shape = 'u8[8192]{0}', space=vmem, size = 0x2000, scoped, tag = 'output window, operand 0']
    %8 = vsyncpa [#allocation4], 0
    %s9 = scalar_lea.sflag [#allocation4], 1
    %10 = vsyncpa %s9, 0
    %11 = vsyncpa [#allocation7], 0
    %12 = vsyncpa [#allocation5], 0
    %s13 = scalar_lea.sflag [#allocation5], 1
    %14 = vsyncpa %s13, 0
    loop: start=0, step=1, limit=4
    $region2: #{tpu_custom_call.1} parent=1 // loop_pre_header
      _
    $region3: #{tpu_custom_call.1} parent=1 // loop_header
      %s16 = sphi 0, %s20
      %p17 = scmp.ge.s32.totalorder %s16, 4
      %s23 = sphi 0, %s49
      %s24 = sphi 0, %s45
      %s25 = sphi 0, %s41
      %s26 = sphi 0, %s37
      %s27 = sphi 0, %s23
      %s28 = sphi 0, %s24
      %s29 = sphi 0, %s25
      %s30 = sphi 0, %s26
      %s31 = sphi 0, %s27
      %s32 = sphi 0, %s28
      %s33 = sphi 0, %s29
      %s34 = sphi 0, %s30
      %s56 = sphi 0, %s58
      %s59 = sphi 0, %s56
      %s60 = sphi 0, %s59
      %s76 = sphi 0, %s60
      %s84 = sphi 0, %s86
      %s87 = sphi 0, %s84
      %s88 = sphi 0, %s87
      %s104 = sphi 0, %s88
      %s110 = sphi 0, %s112
      %s113 = sphi 0, %s110
      %s114 = sphi 0, %s113
      %s130 = sphi 0, %s114
      %s140 = sphi 0, %s142
      %s143 = sphi 0, %s140
      %s144 = sphi 0, %s143
      %s160 = sphi 0, %s144
    $region4: #{tpu_custom_call.1} parent=1 // loop_header_branch
      %19 = sbr.rel (%p17) target = $region8
    $region5: #{tpu_custom_call.1} parent=1 // loop_body
      %s21 = ssub.s32 %s16, 1
      %s22 = ssub.s32 %s16, 2
      %s35 = sadd.s32 1, %s26
      %p36 = scmp.ge.s32.totalorder %s35, 1
      %s37 = scalar_select %p36, 0, %s35
      %s38 = sadd.s32 1, %s25
      %s39 = scalar_select %p36, %s38, %s25
      %p40 = scmp.ge.s32.totalorder %s39, 1
      %s41 = scalar_select %p40, 0, %s39
      %s42 = sadd.s32 1, %s24
      %s43 = scalar_select %p40, %s42, %s24
      %p44 = scmp.ge.s32.totalorder %s43, 1
      %s45 = scalar_select %p44, 0, %s43
      %s46 = sadd.s32 1, %s23
      %s47 = scalar_select %p44, %s46, %s23
      %p48 = scmp.ge.s32.totalorder %s47, 2
      %s49 = scalar_select %p48, 0, %s47
      %s50 = ssub.s32 %s23, %s49
      %s51 = ssub.s32 %s24, %s45
      %s52 = sor.u32 %s50, %s51
      %s53 = ssub.s32 %s26, %s37
      %s54 = sor.u32 %s52, %s53
      %p55 = scmp.eq.s32.totalorder %s54, 0
      %s57 = sadd.s32 %s56, 1
      %s58 = scalar_select %p55, %s56, %s57
      %p61 = pneg %p55
      %p62 = scmp.eq.s32.totalorder %s16, 1
      %p63 = por %p61, %p62
      %p64 = scmp.ne.s32.totalorder %s56, %s59
      %p65 = scmp.eq.s32.totalorder %s16, 0
      %p66 = por %p64, %p65
      %p67 = scmp.ne.s32.totalorder %s56, %s59
      %p68 = scmp.eq.s32.totalorder %s21, 1
      %p69 = por %p67, %p68
      %p70 = scmp.ne.s32.totalorder %s59, %s60
      %p71 = scmp.eq.s32.totalorder %s21, 0
      %p72 = por %p70, %p71
      %p73 = scmp.ne.s32.totalorder %s59, %s60
      %p74 = scmp.eq.s32.totalorder %s22, 1
      %p75 = por %p73, %p74
      %p77 = scmp.ne.s32.totalorder %s60, %s76
      %p78 = scmp.eq.s32.totalorder %s22, 0
      %p79 = por %p77, %p78
      %s80 = ssub.s32 %s26, %s37
      %s81 = ssub.s32 %s25, %s41
      %s82 = sor.u32 %s80, %s81
      %p83 = scmp.eq.s32.totalorder %s82, 0
      %s85 = sadd.s32 %s84, 1
      %s86 = scalar_select %p83, %s84, %s85
      %p89 = pneg %p83
      %p90 = scmp.eq.s32.totalorder %s16, 1
      %p91 = por %p89, %p90
      %p92 = scmp.ne.s32.totalorder %s84, %s87
      %p93 = scmp.eq.s32.totalorder %s16, 0
      %p94 = por %p92, %p93
      %p95 = scmp.ne.s32.totalorder %s84, %s87
      %p96 = scmp.eq.s32.totalorder %s21, 1
      %p97 = por %p95, %p96
      %p98 = scmp.ne.s32.totalorder %s87, %s88
      %p99 = scmp.eq.s32.totalorder %s21, 0
      %p100 = por %p98, %p99
      %p101 = scmp.ne.s32.totalorder %s87, %s88
      %p102 = scmp.eq.s32.totalorder %s22, 1
      %p103 = por %p101, %p102
      %p105 = scmp.ne.s32.totalorder %s88, %s104
      %p106 = scmp.eq.s32.totalorder %s22, 0
      %p107 = por %p105, %p106
      %s108 = ssub.s32 %s25, %s41
      %p109 = scmp.eq.s32.totalorder %s108, 0
      %s111 = sadd.s32 %s110, 1
      %s112 = scalar_select %p109, %s110, %s111
      %p115 = pneg %p109
      %p116 = scmp.eq.s32.totalorder %s16, 1
      %p117 = por %p115, %p116
      %p118 = scmp.ne.s32.totalorder %s110, %s113
      %p119 = scmp.eq.s32.totalorder %s16, 0
      %p120 = por %p118, %p119
      %p121 = scmp.ne.s32.totalorder %s110, %s113
      %p122 = scmp.eq.s32.totalorder %s21, 1
      %p123 = por %p121, %p122
      %p124 = scmp.ne.s32.totalorder %s113, %s114
      %p125 = scmp.eq.s32.totalorder %s21, 0
      %p126 = por %p124, %p125
      %p127 = scmp.ne.s32.totalorder %s113, %s114
      %p128 = scmp.eq.s32.totalorder %s22, 1
      %p129 = por %p127, %p128
      %p131 = scmp.ne.s32.totalorder %s114, %s130
      %p132 = scmp.eq.s32.totalorder %s22, 0
      %p133 = por %p131, %p132
      %s134 = ssub.s32 %s23, %s49
      %s135 = ssub.s32 %s24, %s45
      %s136 = sor.u32 %s134, %s135
      %s137 = ssub.s32 %s25, %s41
      %s138 = sor.u32 %s136, %s137
      %p139 = scmp.eq.s32.totalorder %s138, 0
      %s141 = sadd.s32 %s140, 1
      %s142 = scalar_select %p139, %s140, %s141
      %p145 = pneg %p139
      %p146 = scmp.eq.s32.totalorder %s16, 1
      %p147 = por %p145, %p146
      %p148 = scmp.ne.s32.totalorder %s140, %s143
      %p149 = scmp.eq.s32.totalorder %s16, 0
      %p150 = por %p148, %p149
      %p151 = scmp.ne.s32.totalorder %s140, %s143
      %p152 = scmp.eq.s32.totalorder %s21, 1
      %p153 = por %p151, %p152
      %p154 = scmp.ne.s32.totalorder %s143, %s144
      %p155 = scmp.eq.s32.totalorder %s21, 0
      %p156 = por %p154, %p155
      %p157 = scmp.ne.s32.totalorder %s143, %s144
      %p158 = scmp.eq.s32.totalorder %s22, 1
      %p159 = por %p157, %p158
      %p161 = scmp.ne.s32.totalorder %s144, %s160
      %p162 = scmp.eq.s32.totalorder %s22, 0
      %p163 = por %p161, %p162
      %p164 = scmp.le.s32.totalorder 1, %s16
      %p165 = scmp.lt.s32.totalorder %s16, 3
      %p166 = pnand %p164, %p165
      %p167 = pneg %p166
      // Predicated region
      $region9: #{tpu_custom_call.1} parent=5 // pred_check
        _
      $region10: #{tpu_custom_call.1} parent=5 // pred_check_branch
        %169 = sbr.rel (%p166) target = $region12
      $region11: #{tpu_custom_call.1} parent=5 // pred_region
        %s170 = ssub.s32 %s16, 1
        // Predicated region
        $region13: #{tpu_custom_call.1} parent=11 // pred_check
          %p171 = pneg %p100
        $region14: #{tpu_custom_call.1} parent=11 // pred_check_branch
          %173 = sbr.rel (%p171) target = $region16
        $region15: #{tpu_custom_call.1} parent=11 // pred_region
          %s174 = smul.u32 16, %s30
          %s176 = ssub.s32 1024, 1024
          %177 = vsyncadd [#allocation7], %s176
          %s178 = sadd.s32 %s29, %s174
          %s179 = smul.addr %s178, 64
          %s180 = scalar_lea.hbm %s1, %s179
          %s181 = sshll.u32 [#allocation6], 4
          %s182 = int_to_ptr.vmem [resolvable:$true] %s181
          %187 = dma.hbm_to_vmem [thread:$0]  %s180, 1024, %s182, [#allocation7], 64, 64, 4
        $region16: #{tpu_custom_call.1} parent=11 // pred_fallthru
          _
        // Predicated region
        $region17: #{tpu_custom_call.1} parent=11 // pred_check
          %p188 = pneg %p126
        $region18: #{tpu_custom_call.1} parent=11 // pred_check_branch
          %190 = sbr.rel (%p188) target = $region20
        $region19: #{tpu_custom_call.1} parent=11 // pred_region
          %p191 = scmp.lt.s32.totalorder %s29, 0
          %s192 = scalar_select %p191, %s29, 0
          %s193 = scalar_lea.vmem %s2, %s192
        $region20: #{tpu_custom_call.1} parent=11 // pred_fallthru
          _
      $region12: #{tpu_custom_call.1} parent=5 // pred_fallthru
        _
      %p194 = scmp.lt.s32.totalorder %s16, 2
      // Predicated region
      $region21: #{tpu_custom_call.1} parent=5 // pred_check
        %p195 = pneg %p194
      $region22: #{tpu_custom_call.1} parent=5 // pred_check_branch
        %197 = sbr.rel (%p195) target = $region24
      $region23: #{tpu_custom_call.1} parent=5 // pred_region
        // Predicated region
        $region25: #{tpu_custom_call.1} parent=23 // pred_check
          %p198 = pneg %p66
        $region26: #{tpu_custom_call.1} parent=23 // pred_check_branch
          %200 = sbr.rel (%p198) target = $region28
        $region27: #{tpu_custom_call.1} parent=23 // pred_region
          %s201 = sand.u32 %s56, 1
          %s202 = scalar_lea.sflag [#allocation4], %s201
          %s203 = sand.u32 %s56, 1
          %s204 = smul.addr %s203, 8
          %s205 = scalar_lea.vmem [#allocation3], %s204
          %s206 = smul.u32 2, %s24
          %s208 = ssub.s32 128, 128
          %209 = vsyncadd %s202, %s208
          %s210 = sadd.s32 %s26, %s206
          %s211 = smul.addr %s23, 2
          %s212 = sadd.s32 %s210, %s211
          %s213 = smul.addr %s212, 64
          %s214 = scalar_lea.hbm %s0, %s213
          %s215 = sshll.u32 %s205, 4
          %s216 = int_to_ptr.vmem [resolvable:$true] %s215
          %221 = dma.hbm_to_vmem [thread:$0]  %s214, 128, %s216, %s202, 64, 64, 4
        $region28: #{tpu_custom_call.1} parent=23 // pred_fallthru
          _
      $region24: #{tpu_custom_call.1} parent=5 // pred_fallthru
        _
      %p222 = scmp.le.s32.totalorder 1, %s16
      %p223 = scmp.lt.s32.totalorder %s16, 3
      %p224 = pnand %p222, %p223
      %p225 = pneg %p224
      // Predicated region
      $region29: #{tpu_custom_call.1} parent=5 // pred_check
        _
      $region30: #{tpu_custom_call.1} parent=5 // pred_check_branch
        %227 = sbr.rel (%p224) target = $region32
      $region31: #{tpu_custom_call.1} parent=5 // pred_region
        %s228 = ssub.s32 %s16, 1
        %s229 = sand.u32 %s59, 1
        %s230 = scalar_lea.sflag [#allocation4], %s229
        %s231 = sand.u32 %s59, 1
        %s232 = smul.addr %s231, 8
        %s233 = scalar_lea.vmem [#allocation3], %s232
        // Predicated region
        $region33: #{tpu_custom_call.1} parent=31 // pred_check
          %p234 = pneg %p72
        $region34: #{tpu_custom_call.1} parent=31 // pred_check_branch
          %236 = sbr.rel (%p234) target = $region36
        $region35: #{tpu_custom_call.1} parent=31 // pred_region
          %237 = dma.done %s230, 128
        $region36: #{tpu_custom_call.1} parent=31 // pred_fallthru
          _
        // Predicated region
        $region37: #{tpu_custom_call.1} parent=31 // pred_check
          %p238 = pneg %p100
        $region38: #{tpu_custom_call.1} parent=31 // pred_check_branch
          %240 = sbr.rel (%p238) target = $region40
        $region39: #{tpu_custom_call.1} parent=31 // pred_region
          %241 = dma.done [#allocation7], 1024
        $region40: #{tpu_custom_call.1} parent=31 // pred_fallthru
          _
        %s242 = sand.u32 %s59, 1
        %s243 = scalar_lea.sflag [#allocation4], %s242
        %s244 = sand.u32 %s59, 1
        %s245 = smul.addr %s244, 8
        %s246 = scalar_lea.vmem [#allocation3], %s245
        %p247 = pneg %p72
        %p248 = pneg %p69
        %p249 = pneg %p100
        %p250 = pneg %p97
        %p251 = scmp.lt.s32.totalorder %s29, 0
        %s252 = scalar_select %p251, %s29, 0
        %s253 = scalar_lea.vmem %s2, %s252
        %p254 = pneg %p126
        %p255 = pneg %p123
        %p256 = pneg %p156
        %p257 = pneg %p153
        %s258 = sand.u32 %s143, 1
        %s259 = scalar_lea.sflag [#allocation5], %s258
        %s260 = sand.u32 %s143, 1
        %s261 = smul.addr %s260, 8
        %s262 = scalar_lea.vmem [#allocation8], %s261
        %s263 = smul.u32 2, %s28
        %s264 = smul.u32 16, %s30
        %p265 = scmp.lt.s32.totalorder %s29, 0
        %s266 = scalar_select %p265, %s29, 0
        %s267 = scalar_lea.vmem %s2, %s266
        %s268 = smul.u32 2, %s28
        %p270 = scmp.eq.s32.totalorder %s30, 0
        // Predicated region
        $region41: #{tpu_custom_call.1} parent=31 // pred_check
          %p271 = pneg %p270
        $region42: #{tpu_custom_call.1} parent=31 // pred_check_branch
          %273 = sbr.rel (%p271) target = $region44
        $region43: #{tpu_custom_call.1} parent=31 // pred_region
          %274 = vst [vmem:[#allocation2] sm:$0xff] 0.0
          %275 = vst [vmem:[#allocation2 + $0x8] sm:$0xff] 0.0
        $region44: #{tpu_custom_call.1} parent=31 // pred_fallthru
          _
        %v276 = vld [vmem:[#allocation2] sm:$0xff]
        %v277 = vld [vmem:[#allocation2 + $0x8] sm:$0xff]
        %v278 = vld [vmem:[%s233] sm:$0xf]
        %v279 = vld [vmem:[%s233 + $0x4] sm:$0xf]
        %v280 = vld [vmem:[#allocation6] sm:$0xf]
        %v281 = vld [vmem:[#allocation6 + $0x4] sm:$0xf]
        %v282 = vld [vmem:[#allocation6 + $0x8] sm:$0xf]
        %v283 = vld [vmem:[#allocation6 + $0xc] sm:$0xf]
        %v284 = vld [vmem:[#allocation6 + $0x10] sm:$0xf]
        %v285 = vld [vmem:[#allocation6 + $0x14] sm:$0xf]
        %v286 = vld [vmem:[#allocation6 + $0x18] sm:$0xf]
        %v287 = vld [vmem:[#allocation6 + $0x1c] sm:$0xf]
        %v288 = vld [vmem:[#allocation6 + $0x20] sm:$0xf]
        %v289 = vld [vmem:[#allocation6 + $0x24] sm:$0xf]
        %v290 = vld [vmem:[#allocation6 + $0x28] sm:$0xf]
        %v291 = vld [vmem:[#allocation6 + $0x2c] sm:$0xf]
        %v292 = vld [vmem:[#allocation6 + $0x30] sm:$0xf]
        %v293 = vld [vmem:[#allocation6 + $0x34] sm:$0xf]
        %v294 = vld [vmem:[#allocation6 + $0x38] sm:$0xf]
        %v295 = vld [vmem:[#allocation6 + $0x3c] sm:$0xf]
        %v298 = vunpack.c.l.b16 %v278
        %v299 = vunpack.c.l.b16 %v279
        %v300 = vpack.c.b16 %v299, %v298
        %v318 = vunpack.c.l.b16 %v280
        %v319 = vunpack.c.l.b16 %v281
        %v320 = vunpack.c.l.b16 %v282
        %v321 = vunpack.c.l.b16 %v283
        %v322 = vunpack.c.l.b16 %v284
        %v323 = vunpack.c.l.b16 %v285
        %v324 = vunpack.c.l.b16 %v286
        %v325 = vunpack.c.l.b16 %v287
        %v326 = vunpack.c.l.b16 %v288
        %v327 = vunpack.c.l.b16 %v289
        %v328 = vunpack.c.l.b16 %v290
        %v329 = vunpack.c.l.b16 %v291
        %v330 = vunpack.c.l.b16 %v292
        %v331 = vunpack.c.l.b16 %v293
        %v332 = vunpack.c.l.b16 %v294
        %v333 = vunpack.c.l.b16 %v295
        %v334 = vpack.c.b16 %v319, %v318
        %v335 = vpack.c.b16 %v321, %v320
        %v336 = vpack.c.b16 %v323, %v322
        %v337 = vpack.c.b16 %v325, %v324
        %v338 = vpack.c.b16 %v327, %v326
        %v339 = vpack.c.b16 %v329, %v328
        %v340 = vpack.c.b16 %v331, %v330
        %v341 = vpack.c.b16 %v333, %v332
        %350 = vmatprep.subr.bf16.mxu0 0
        %351 = vmatpush1.bf16.msra.mxu0 %v334
        %352 = vmatprep.subr.bf16.mxu0 0
        %353 = vmatpush1.bf16.msra.mxu0 %v335
        %354 = vmatprep.subr.bf16.mxu0 0
        %355 = vmatpush1.bf16.msra.mxu0 %v336
        %356 = vmatprep.subr.bf16.mxu0 0
        %357 = vmatpush1.bf16.msra.mxu0 %v337
        %358 = vmatprep.subr.bf16.mxu0 0
        %359 = vmatpush1.bf16.msra.mxu0 %v338
        %360 = vmatprep.subr.bf16.mxu0 0
        %361 = vmatpush1.bf16.msra.mxu0 %v339
        %362 = vmatprep.subr.bf16.mxu0 0
        %363 = vmatpush1.bf16.msra.mxu0 %v340
        %364 = vmatprep.subr.bf16.mxu0 0
        %365 = vmatpush1.bf16.msra.mxu0 %v341
        %366 = vmatprep.subr.bf16.mxu0 0
        %367 = vmatpush1.bf16.msra.mxu0 0
        %368 = vmatprep.subr.bf16.mxu0 0
        %369 = vmatpush1.bf16.msra.mxu0 0
        %370 = vmatprep.subr.bf16.mxu0 0
        %371 = vmatpush1.bf16.msra.mxu0 0
        %372 = vmatprep.subr.bf16.mxu0 0
        %373 = vmatpush1.bf16.msra.mxu0 0
        %374 = vmatprep.subr.bf16.mxu0 0
        %375 = vmatpush1.bf16.msra.mxu0 0
        %376 = vmatprep.subr.bf16.mxu0 0
        %377 = vmatpush1.bf16.msra.mxu0 0
        %378 = vmatprep.subr.bf16.mxu0 0
        %379 = vmatpush1.bf16.msra.mxu0 0
        %380 = vmatprep.subr.bf16.mxu0 0
        %381 = vmatpush1.bf16.msra.mxu0 0
        %382 = vmatprep.mubr.bf16.mxu0 0
        %383 = vmatmul.mubr.bf16.gmra.mrb[0].mxu0 %v300
        %v384 = vpop.f32.mrb[0].mxu0
        %v385 = vadd.f32 0.0, %v384
        %v386 = vpop.f32.mrb[0].mxu0
        %v387 = vpop.f32.mrb[0].mxu0
        %v388 = vadd.f32 0.0, %v387
        %v389 = vpop.f32.mrb[0].mxu0
        %390 = vdwg.mxu0
        %v391 = vadd.f32 %v276, %v385
        %v392 = vadd.f32 %v277, %v388
        %393 = vst [vmem:[#allocation2] sm:$0xff] %v391
        %394 = vst [vmem:[#allocation2 + $0x8] sm:$0xff] %v392
        // Predicated region
        $region45: #{tpu_custom_call.1} parent=31 // pred_check
          %p395 = pneg %p270
        $region46: #{tpu_custom_call.1} parent=31 // pred_check_branch
          %397 = sbr.rel (%p395) target = $region48
        $region47: #{tpu_custom_call.1} parent=31 // pred_region
          %v398 = vld [vmem:[#allocation2] sm:$0xff]
          %v399 = vld [vmem:[#allocation2 + $0x8] sm:$0xff]
          %v400 = vld [vmem:[%s267] sm:$0x1]
          %v402 = vlaneseq
          %v403 = vshrl.u32 %v402, 7
          %v404 = vsub.s32 0, %v403
          %v405 = vrot.slane %v400, %v404
          %v407 = vadd.f32 %v398, %v405
          %v408 = vadd.f32 %v399, %v405
          %v409 = vmax.f32 %v407, 0.0
          %v410 = vmax.f32 %v408, 0.0
          %v411 = vpack.c.bf16 %v410, %v409
          %v413 = vunpack.c.l.b16 %v411
          %v414 = vunpack.c.h.b16 %v411
          %v415 = vpack.c.b16 %v413, %v413
          %v416 = vpack.c.b16 %v414, %v414
          %419 = vst [vmem:[%s262] sm:$0xf] %v415
          %420 = vst [vmem:[%s262 + $0x4] sm:$0xf] %v416
        $region48: #{tpu_custom_call.1} parent=31 // pred_fallthru
          _
        %s421 = sand.u32 %s143, 1
        %s422 = scalar_lea.sflag [#allocation5], %s421
        %s423 = sand.u32 %s143, 1
        %s424 = smul.addr %s423, 8
        %s425 = scalar_lea.vmem [#allocation8], %s424
        // Predicated region
        $region49: #{tpu_custom_call.1} parent=31 // pred_check
          %p426 = pneg %p153
        $region50: #{tpu_custom_call.1} parent=31 // pred_check_branch
          %428 = sbr.rel (%p426) target = $region52
        $region51: #{tpu_custom_call.1} parent=31 // pred_region
          %s429 = smul.u32 2, %s28
          %s431 = ssub.s32 128, 128
          %432 = vsyncadd %s422, %s431
          %s433 = sadd.s32 %s29, %s429
          %s434 = smul.addr %s27, 2
          %s435 = sadd.s32 %s433, %s434
          %s436 = smul.addr %s435, 64
          %s437 = scalar_lea.hbm %s3, %s436
          %s438 = sshll.u32 %s425, 4
          %s439 = int_to_ptr.vmem [resolvable:$true] %s438
          %444 = dma.vmem_to_hbm [thread:$0]  %s439, 128, %s437, %s422, 64, 64, 4
        $region52: #{tpu_custom_call.1} parent=31 // pred_fallthru
          _
      $region32: #{tpu_custom_call.1} parent=5 // pred_fallthru
        _
      %p445 = scmp.le.s32.totalorder 2, %s16
      // Predicated region
      $region53: #{tpu_custom_call.1} parent=5 // pred_check
        %p446 = pneg %p445
      $region54: #{tpu_custom_call.1} parent=5 // pred_check_branch
        %448 = sbr.rel (%p446) target = $region56
      $region55: #{tpu_custom_call.1} parent=5 // pred_region
        %s449 = ssub.s32 %s16, 2
        // Predicated region
        $region57: #{tpu_custom_call.1} parent=55 // pred_check
          %p450 = pneg %p159
        $region58: #{tpu_custom_call.1} parent=55 // pred_check_branch
          %452 = sbr.rel (%p450) target = $region60
        $region59: #{tpu_custom_call.1} parent=55 // pred_region
          %s453 = sand.u32 %s144, 1
          %s454 = scalar_lea.sflag [#allocation5], %s453
          %s455 = sand.u32 %s144, 1
          %s456 = smul.addr %s455, 8
          %s457 = scalar_lea.vmem [#allocation8], %s456
          %458 = dma.done %s454, 128
        $region60: #{tpu_custom_call.1} parent=55 // pred_fallthru
          _
      $region56: #{tpu_custom_call.1} parent=5 // pred_fallthru
        _
    $region6: #{tpu_custom_call.1} parent=1 // loop_footer
      %s20 = sadd.s32 1, %s16
    $region7: #{tpu_custom_call.1} parent=1 // loop_footer_branch
      %15 = sbr.rel target = $region3
    $region8: #{tpu_custom_call.1} parent=1 // loop_exit
      _
    %459 = vsyncpa [#allocation4], 1
    %s460 = scalar_lea.sflag [#allocation4], 1
    %461 = vsyncpa %s460, 1
    %462 = vsyncpa [#allocation7], 1
    %463 = vsyncpa [#allocation5], 1
    %s464 = scalar_lea.sflag [#allocation5], 1
    %465 = vsyncpa %s464, 1

</llo_original>
